<compile_context>
chip_gen: v5e
topology: v5e:2x2
jax: 0.10.0
libtpu: 0.0.40
codegen_flags: <defaults>
</compile_context>

<pallas_src>
import jax
import jax.numpy as jnp
from jax.experimental import pallas as pl
from jax.experimental.pallas import tpu as pltpu


def _make_kernel(x_resident: bool, tk: int):
    """grid = (dst-row blocks i [parallel], src blocks k [arbitrary/reduction])."""

    def kernel(adj_ref, xh_ref, xl_ref, dsc_ref,
               wc_ref, bc_ref, w1_ref, b1_ref, w2_ref, b2_ref,
               out_ref, acc_ref):
        k = pl.program_id(1)

        @pl.when(k == 0)
        def _init():
            acc_ref[...] = jnp.zeros_like(acc_ref)

        if x_resident:
            # x (hi/lo) lives fully in VMEM; slice the k-th src chunk.
            row = pl.multiple_of(k * tk, tk)
            xh = xh_ref[pl.ds(row, tk), :]
            xl = xl_ref[pl.ds(row, tk), :]
        else:
            xh = xh_ref[...]
            xl = xl_ref[...]

        adj = adj_ref[...]  # bf16 0/1 tile, fed straight to the MXU (exact)
        # TODO(synk): on v7x a single bf16 matmul (drop the lo half) halves MXU work
        #             if the caller tolerates ~1e-3 relative error on X.
        acc_ref[...] += (jnp.dot(adj, xh, preferred_element_type=jnp.float32)
                         + jnp.dot(adj, xl, preferred_element_type=jnp.float32))

        @pl.when(k == pl.num_programs(1) - 1)
        def _finalize():
            # dst-side normalization, then conv projection + FC stack (+ ReLU).
            h = acc_ref[...] * dsc_ref[...]                                    # [tm, Din]
            z = jnp.dot(h, wc_ref[...], preferred_element_type=jnp.float32) + bc_ref[...]
            z = jnp.maximum(z, 0.0)
            z = jnp.dot(z, w1_ref[...], preferred_element_type=jnp.float32) + b1_ref[...]
            z = jnp.maximum(z, 0.0)
            z = jnp.dot(z, w2_ref[...], preferred_element_type=jnp.float32) + b2_ref[...]
            z = jnp.maximum(z, 0.0)
            out_ref[...] = z.astype(out_ref.dtype)

    return kernel


def _round_up(v, m):
    return ((v + m - 1) // m) * m


def _pad_to(a, shape):
    return jnp.pad(a, [(0, t - s) for s, t in zip(a.shape, shape)])


def graph_conv_block(adj, x, wc, bc, w1, b1, w2, b2, *,
                     tm=1024, tk=1024, resident_x=None, adj_buffers=2):
    """adj: [N, N] dense A[dst, src]; x: [N, D_in]; weights stored as [D_in, D_out]."""
    n, d_in = x.shape
    d_conv = wc.shape[1]
    d_mid = w1.shape[1]
    d_out = w2.shape[1]

    # --- degrees: one cheap mem-bound pass outside the tiled kernel -------------
    adj_f32 = adj.astype(jnp.float32)
    in_deg = jnp.maximum(jnp.sum(adj_f32, axis=1), 1.0)                  # [N]
    out_deg = jnp.maximum(jnp.sum(adj_f32, axis=0), 1.0)                 # [N]
    dst_scale = jax.lax.rsqrt(in_deg)[:, None]                           # [N, 1]
    src_scale = jax.lax.rsqrt(out_deg)[:, None]                          # [N, 1]

    # --- tile selection ----------------------------------------------------------
    n128 = _round_up(n, 128)
    tm = _round_up(tm, 128)
    tk = _round_up(tk, 128)
    if n128 >= 256:
        # v7x has 2 TensorCores: keep >= 2 blocks on the 'parallel' row axis.
        tm = min(tm, _round_up((n128 + 1) // 2, 128))
    tm = min(tm, n128)
    tk = min(tk, n128)
    nm = _round_up(n, tm)            # padded dst rows
    nk = _round_up(n, tk)            # padded src cols
    dip = _round_up(d_in, 128)       # lane-dense feature dims
    dcp = _round_up(d_conv, 128)
    dmp = _round_up(d_mid, 128)
    dop = _round_up(d_out, 128)

    # x fully VMEM-resident when small: hi + lo bf16, double-buffered -> budget.
    if resident_x is None:
        resident_x = (nk * dip * 2 * 2 * 2) <= (16 * 1024 * 1024)

    # --- operand prep ------------------------------------------------------------
    # cast to bf16 BEFORE padding: avoids materializing an nm x nk f32 intermediate.
    adj_p = _pad_to(adj.astype(jnp.bfloat16), (nm, nk))
    # fold src-side normalization into x; split into bf16 hi/lo for ~f32 accuracy.
    x_s = x.astype(jnp.float32) * src_scale                              # [N, D_in]
    x_hi = x_s.astype(jnp.bfloat16)
    x_lo = (x_s - x_hi.astype(jnp.float32)).astype(jnp.bfloat16)
    xh_p = _pad_to(x_hi, (nk, dip))
    xl_p = _pad_to(x_lo, (nk, dip))
    dsc_p = _pad_to(dst_scale.astype(jnp.float32), (nm, 1))
    wc_p = _pad_to(wc, (dip, dcp))
    bc_p = _pad_to(bc, (1, dcp))
    w1_p = _pad_to(w1, (dcp, dmp))
    b1_p = _pad_to(b1, (1, dmp))
    w2_p = _pad_to(w2, (dmp, dop))
    b2_p = _pad_to(b2, (1, dop))

    grid = (nm // tm, nk // tk)

    def const_spec(shape):
        # Constant index_map: tiles are DMA'd once and stay VMEM-resident.
        return pl.BlockSpec(shape, lambda i, k: (0, 0))

    adj_kwargs = {}
    if adj_buffers is not None and adj_buffers != 2:
        # v7x: deeper buffering (e.g. 3) hides DMA issue latency at 3.2 TB/s HBM.
        adj_kwargs["pipeline_mode"] = pl.Buffered(adj_buffers)
    adj_spec = pl.BlockSpec((tm, tk), lambda i, k: (i, k), **adj_kwargs)

    if resident_x:
        x_spec = const_spec((nk, dip))
        x_bytes = 2 * nk * dip * 2                       # hi + lo, DMA'd once
    else:
        x_spec = pl.BlockSpec((tk, dip), lambda i, k: (k, 0))
        x_bytes = (nm // tm) * 2 * nk * dip * 2          # re-streamed per row block

    flops = (4 * nm * nk * dip                           # two bf16 matmuls (hi/lo)
             + 2 * nm * (dip * dcp + dcp * dmp + dmp * dop))
    bytes_accessed = (nm * nk * 2 + x_bytes + nm * 4 + nm * dop * 4
                      + (wc_p.size + w1_p.size + w2_p.size
                         + bc_p.size + b1_p.size + b2_p.size) * 4)

    out = pl.pallas_call(
        _make_kernel(resident_x, tk),
        out_shape=jax.ShapeDtypeStruct((nm, dop), jnp.float32),
        grid_spec=pltpu.PrefetchScalarGridSpec(
            num_scalar_prefetch=0,
            grid=grid,
            in_specs=[
                adj_spec,                                      # adj tile (bf16)
                x_spec,                                        # x hi (bf16, src-scaled)
                x_spec,                                        # x lo (bf16)
                pl.BlockSpec((tm, 1), lambda i, k: (i, 0)),    # rsqrt(in_deg) slice
                const_spec((dip, dcp)), const_spec((1, dcp)),  # conv weight/bias
                const_spec((dcp, dmp)), const_spec((1, dmp)),  # fc1
                const_spec((dmp, dop)), const_spec((1, dop)),  # fc2
            ],
            out_specs=pl.BlockSpec((tm, dop), lambda i, k: (i, 0)),
            scratch_shapes=[pltpu.VMEM((tm, dip), jnp.float32)],  # A@X accumulator
        ),
        compiler_params=pltpu.CompilerParams(
            dimension_semantics=("parallel", "arbitrary"),
            vmem_limit_bytes=32 * 1024 * 1024,
        ),
        cost_estimate=pl.CostEstimate(
            flops=flops, transcendentals=0, bytes_accessed=bytes_accessed),
    )(adj_p, xh_p, xl_p, dsc_p, wc_p, bc_p, w1_p, b1_p, w2_p, b2_p)

    return out[:n, :d_out]


def reference(adj, x, wc, bc, w1, b1, w2, b2):
    in_deg = jnp.maximum(adj.sum(axis=1, keepdims=True), 1.0)
    out_deg = jnp.maximum(adj.sum(axis=0, keepdims=True), 1.0)
    adj_n = adj / jnp.sqrt(in_deg) / jnp.sqrt(out_deg)
    z = jnp.maximum(adj_n @ x @ wc + bc, 0.0)
    z = jnp.maximum(z @ w1 + b1, 0.0)
    z = jnp.maximum(z @ w2 + b2, 0.0)
    return z


def _make_graph(key, n):
    """Deterministic sparse-ish directed graph as dense A[dst, src]: ring + extras."""
    adj = jnp.zeros((n, n), dtype=jnp.float32)
    idx = jnp.arange(n)
    adj = adj.at[(idx + 1) % n, idx].set(1.0)
    adj = adj.at[idx, (idx + 1) % n].set(1.0)
    extra = (jax.random.uniform(key, (n, n)) < 0.1).astype(jnp.float32)
    adj = jnp.clip(adj + extra, 0.0, 1.0)
    return adj * (1.0 - jnp.eye(n, dtype=jnp.float32))  # no self-loops


def _linear_params(kw, kb, d_in, d_out):
    bound = 1.0 / jnp.sqrt(d_in)
    w = jax.random.uniform(kw, (d_in, d_out), minval=-bound, maxval=bound,
                           dtype=jnp.float32)
    b = jax.random.uniform(kb, (1, d_out), minval=-bound, maxval=bound,
                           dtype=jnp.float32)
    return w, b


if __name__ == "__main__":
    # GraphConvBlock(in_dim=8, out_dim=32, num_fc_layers=3, fc_out_dim=None, ReLU)
    IN_DIM, OUT_DIM = 8, 32
    FC_DIM = OUT_DIM  # fc_out_dim=None -> out_dim; linspace(32,32,3) -> [32,32,32]

    key = jax.random.PRNGKey(0)
    k_f1, k_e1, k_f2, k_e2, k_wc, k_bc, k_w1, k_b1, k_w2, k_b2 = jax.random.split(key, 10)

    wc, bc = _linear_params(k_wc, k_bc, IN_DIM, OUT_DIM)   # GraphConv weight/bias
    w1, b1 = _linear_params(k_w1, k_b1, OUT_DIM, FC_DIM)   # fc layer 1
    w2, b2 = _linear_params(k_w2, k_b2, FC_DIM, FC_DIM)    # fc layer 2

    TOL = 5e-5  # bf16 hi/lo split keeps ~1e-5 fidelity vs the f32 reference

    # --- test 1: tiny graph (16 nodes), single grid step, resident x ------------
    N1 = 16
    x1 = jax.random.normal(k_f1, (N1, IN_DIM), dtype=jnp.float32)
    adj1 = _make_graph(k_e1, N1)
    out1 = jax.block_until_ready(graph_conv_block(adj1, x1, wc, bc, w1, b1, w2, b2))
    ref1 = reference(adj1, x1, wc, bc, w1, b1, w2, b2)
    assert out1.shape == (N1, FC_DIM)
    assert jnp.allclose(out1, ref1, atol=TOL, rtol=TOL)

    # --- test 2: 300 nodes, multi-step (3 x 3) grid, resident x -----------------
    N2 = 300
    x2 = jax.random.normal(k_f2, (N2, IN_DIM), dtype=jnp.float32)
    adj2 = _make_graph(k_e2, N2)
    out2 = jax.block_until_ready(
        graph_conv_block(adj2, x2, wc, bc, w1, b1, w2, b2, tm=128, tk=128))
    ref2 = reference(adj2, x2, wc, bc, w1, b1, w2, b2)
    assert out2.shape == (N2, FC_DIM)
    assert jnp.allclose(out2, ref2, atol=TOL, rtol=TOL)

    # --- test 3: same graph, streamed-x fallback path (large-N code path) -------
    out3 = jax.block_until_ready(
        graph_conv_block(adj2, x2, wc, bc, w1, b1, w2, b2,
                         tm=256, tk=128, resident_x=False))
    assert out3.shape == (N2, FC_DIM)
    assert jnp.allclose(out3, ref2, atol=TOL, rtol=TOL)

    print("KERNEL_OK")
</pallas_src>

<mosaic_0001>
module attributes {stable_mosaic.version = 11 : i64} {
  func.func @kernel(%arg0: i32, %arg1: i32, %arg2: memref<128x128xbf16, #tpu.memory_space<vmem>>, %arg3: memref<128x128xbf16, #tpu.memory_space<vmem>>, %arg4: memref<128x128xbf16, #tpu.memory_space<vmem>>, %arg5: memref<128x1xf32, #tpu.memory_space<vmem>>, %arg6: memref<128x128xf32, #tpu.memory_space<vmem>>, %arg7: memref<1x128xf32, #tpu.memory_space<vmem>>, %arg8: memref<128x128xf32, #tpu.memory_space<vmem>>, %arg9: memref<1x128xf32, #tpu.memory_space<vmem>>, %arg10: memref<128x128xf32, #tpu.memory_space<vmem>>, %arg11: memref<1x128xf32, #tpu.memory_space<vmem>>, %arg12: memref<128x128xf32, #tpu.memory_space<vmem>>, %arg13: memref<128x128xf32, #tpu.memory_space<vmem>>) attributes {dimension_semantics = [#tpu.dimension_semantics<parallel>, #tpu.dimension_semantics<arbitrary>], iteration_bounds = array<i64: 1, 1>, scalar_prefetch = 0 : i64, scratch_operands = 1 : i64, tpu.core_type = #tpu.core_type<tc>, window_params = [{transform_indices = @transform_0, window_bounds = array<i64: 128, 128>}, {pipeline_mode = #tpu.pipeline_mode<synchronous>, transform_indices = @transform_1, window_bounds = array<i64: 128, 128>}, {pipeline_mode = #tpu.pipeline_mode<synchronous>, transform_indices = @transform_2, window_bounds = array<i64: 128, 128>}, {transform_indices = @transform_3, window_bounds = array<i64: 128, 1>}, {pipeline_mode = #tpu.pipeline_mode<synchronous>, transform_indices = @transform_4, window_bounds = array<i64: 128, 128>}, {pipeline_mode = #tpu.pipeline_mode<synchronous>, transform_indices = @transform_5, window_bounds = array<i64: 1, 128>}, {pipeline_mode = #tpu.pipeline_mode<synchronous>, transform_indices = @transform_6, window_bounds = array<i64: 128, 128>}, {pipeline_mode = #tpu.pipeline_mode<synchronous>, transform_indices = @transform_7, window_bounds = array<i64: 1, 128>}, {pipeline_mode = #tpu.pipeline_mode<synchronous>, transform_indices = @transform_8, window_bounds = array<i64: 128, 128>}, {pipeline_mode = #tpu.pipeline_mode<synchronous>, transform_indices = @transform_9, window_bounds = array<i64: 1, 128>}, {transform_indices = @transform_10, window_bounds = array<i64: 128, 128>}]} {
    %c0_i32 = arith.constant 0 : i32
    %0 = arith.cmpi eq, %arg1, %c0_i32 : i32
    %1 = arith.extui %0 : i1 to i32
    %c0_i32_0 = arith.constant 0 : i32
    %2 = arith.cmpi ne, %1, %c0_i32_0 : i32
    scf.if %2 {
      %cst_11 = arith.constant 0.000000e+00 : f32
      %19 = vector.broadcast %cst_11 : f32 to vector<128x128xf32>
      %c0_12 = arith.constant 0 : index
      %c0_13 = arith.constant 0 : index
      %20 = vector.load %arg13[%c0_12, %c0_13] : memref<128x128xf32, #tpu.memory_space<vmem>>, vector<128x128xf32>
      tpu.vector_store %arg13[%c0_12, %c0_13], %19 {strides = array<i32>} : memref<128x128xf32, #tpu.memory_space<vmem>>, vector<128x128xf32>,
    } else {
    }
    %c128_i32 = arith.constant 128 : i32
    %3 = arith.muli %arg1, %c128_i32 : i32
    %4 = tpu.assume_multiple %3, 128 : i32
    %5 = arith.index_cast %4 : i32 to index
    %c0 = arith.constant 0 : index
    %6 = vector.load %arg3[%5, %c0] : memref<128x128xbf16, #tpu.memory_space<vmem>>, vector<128x128xbf16>
    %7 = arith.index_cast %4 : i32 to index
    %c0_1 = arith.constant 0 : index
    %8 = vector.load %arg4[%7, %c0_1] : memref<128x128xbf16, #tpu.memory_space<vmem>>, vector<128x128xbf16>
    %c0_2 = arith.constant 0 : index
    %c0_3 = arith.constant 0 : index
    %9 = vector.load %arg2[%c0_2, %c0_3] : memref<128x128xbf16, #tpu.memory_space<vmem>>, vector<128x128xbf16>
    %c0_4 = arith.constant 0 : index
    %c0_5 = arith.constant 0 : index
    %10 = vector.load %arg13[%c0_4, %c0_5] : memref<128x128xf32, #tpu.memory_space<vmem>>, vector<128x128xf32>
    %cst = arith.constant dense<0.000000e+00> : vector<128x128xf32>
    %11 = tpu.matmul %9, %6, %cst {dimension_numbers = #tpu.dot_dimension_numbers<[1], [0], [0], [1], [0, 0, 1, 1], [], []>} : vector<128x128xbf16>, vector<128x128xbf16>, vector<128x128xf32> -> vector<128x128xf32>
    %cst_6 = arith.constant dense<0.000000e+00> : vector<128x128xf32>
    %12 = tpu.matmul %9, %8, %cst_6 {dimension_numbers = #tpu.dot_dimension_numbers<[1], [0], [0], [1], [0, 0, 1, 1], [], []>} : vector<128x128xbf16>, vector<128x128xbf16>, vector<128x128xf32> -> vector<128x128xf32>
    %13 = arith.addf %11, %12 : vector<128x128xf32>
    %14 = arith.addf %10, %13 : vector<128x128xf32>
    %c0_7 = arith.constant 0 : index
    %c0_8 = arith.constant 0 : index
    %15 = vector.load %arg13[%c0_7, %c0_8] : memref<128x128xf32, #tpu.memory_space<vmem>>, vector<128x128xf32>
    tpu.vector_store %arg13[%c0_7, %c0_8], %14 {strides = array<i32>} : memref<128x128xf32, #tpu.memory_space<vmem>>, vector<128x128xf32>,
    %c0_i32_9 = arith.constant 0 : i32
    %16 = arith.cmpi eq, %arg1, %c0_i32_9 : i32
    %17 = arith.extui %16 : i1 to i32
    %c0_i32_10 = arith.constant 0 : i32
    %18 = arith.cmpi ne, %17, %c0_i32_10 : i32
    scf.if %18 {
      %c0_11 = arith.constant 0 : index
      %c0_12 = arith.constant 0 : index
      %19 = vector.load %arg13[%c0_11, %c0_12] : memref<128x128xf32, #tpu.memory_space<vmem>>, vector<128x128xf32>
      %c0_13 = arith.constant 0 : index
      %c0_14 = arith.constant 0 : index
      %20 = vector.load %arg5[%c0_13, %c0_14] : memref<128x1xf32, #tpu.memory_space<vmem>>, vector<128x1xf32>
      %21 = vector.broadcast %20 : vector<128x1xf32> to vector<128x128xf32>
      %22 = arith.mulf %19, %21 : vector<128x128xf32>
      %c0_15 = arith.constant 0 : index
      %c0_16 = arith.constant 0 : index
      %23 = vector.load %arg6[%c0_15, %c0_16] : memref<128x128xf32, #tpu.memory_space<vmem>>, vector<128x128xf32>
      %cst_17 = arith.constant dense<0.000000e+00> : vector<128x128xf32>
      %24 = tpu.matmul %22, %23, %cst_17 {dimension_numbers = #tpu.dot_dimension_numbers<[1], [0], [0], [1], [0, 0, 1, 1], [], []>} : vector<128x128xf32>, vector<128x128xf32>, vector<128x128xf32> -> vector<128x128xf32>
      %c0_18 = arith.constant 0 : index
      %c0_19 = arith.constant 0 : index
      %25 = vector.load %arg7[%c0_18, %c0_19] : memref<1x128xf32, #tpu.memory_space<vmem>>, vector<1x128xf32>
      %26 = vector.broadcast %25 : vector<1x128xf32> to vector<128x128xf32>
      %27 = arith.addf %24, %26 : vector<128x128xf32>
      %cst_20 = arith.constant 0.000000e+00 : f32
      %28 = vector.broadcast %cst_20 : f32 to vector<128x128xf32>
      %29 = arith.maximumf %27, %28 : vector<128x128xf32>
      %c0_21 = arith.constant 0 : index
      %c0_22 = arith.constant 0 : index
      %30 = vector.load %arg8[%c0_21, %c0_22] : memref<128x128xf32, #tpu.memory_space<vmem>>, vector<128x128xf32>
      %cst_23 = arith.constant dense<0.000000e+00> : vector<128x128xf32>
      %31 = tpu.matmul %29, %30, %cst_23 {dimension_numbers = #tpu.dot_dimension_numbers<[1], [0], [0], [1], [0, 0, 1, 1], [], []>} : vector<128x128xf32>, vector<128x128xf32>, vector<128x128xf32> -> vector<128x128xf32>
      %c0_24 = arith.constant 0 : index
      %c0_25 = arith.constant 0 : index
      %32 = vector.load %arg9[%c0_24, %c0_25] : memref<1x128xf32, #tpu.memory_space<vmem>>, vector<1x128xf32>
      %33 = vector.broadcast %32 : vector<1x128xf32> to vector<128x128xf32>
      %34 = arith.addf %31, %33 : vector<128x128xf32>
      %cst_26 = arith.constant 0.000000e+00 : f32
      %35 = vector.broadcast %cst_26 : f32 to vector<128x128xf32>
      %36 = arith.maximumf %34, %35 : vector<128x128xf32>
      %c0_27 = arith.constant 0 : index
      %c0_28 = arith.constant 0 : index
      %37 = vector.load %arg10[%c0_27, %c0_28] : memref<128x128xf32, #tpu.memory_space<vmem>>, vector<128x128xf32>
      %cst_29 = arith.constant dense<0.000000e+00> : vector<128x128xf32>
      %38 = tpu.matmul %36, %37, %cst_29 {dimension_numbers = #tpu.dot_dimension_numbers<[1], [0], [0], [1], [0, 0, 1, 1], [], []>} : vector<128x128xf32>, vector<128x128xf32>, vector<128x128xf32> -> vector<128x128xf32>
      %c0_30 = arith.constant 0 : index
      %c0_31 = arith.constant 0 : index
      %39 = vector.load %arg11[%c0_30, %c0_31] : memref<1x128xf32, #tpu.memory_space<vmem>>, vector<1x128xf32>
      %40 = vector.broadcast %39 : vector<1x128xf32> to vector<128x128xf32>
      %41 = arith.addf %38, %40 : vector<128x128xf32>
      %cst_32 = arith.constant 0.000000e+00 : f32
      %42 = vector.broadcast %cst_32 : f32 to vector<128x128xf32>
      %43 = arith.maximumf %41, %42 : vector<128x128xf32>
      %c0_33 = arith.constant 0 : index
      %c0_34 = arith.constant 0 : index
      %44 = vector.load %arg12[%c0_33, %c0_34] : memref<128x128xf32, #tpu.memory_space<vmem>>, vector<128x128xf32>
      tpu.vector_store %arg12[%c0_33, %c0_34], %43 {strides = array<i32>} : memref<128x128xf32, #tpu.memory_space<vmem>>, vector<128x128xf32>,
    } else {
    }
    return
  }
  func.func @transform_0(%arg0: i32, %arg1: i32) -> (i32, i32) {
    %c0_i32 = arith.constant 0 : i32
    return %arg0, %arg1 : i32, i32
  }
  func.func @transform_1(%arg0: i32, %arg1: i32) -> (i32, i32) {
    %c0_i32 = arith.constant 0 : i32
    %c0_i32_0 = arith.constant 0 : i32
    %c0_i32_1 = arith.constant 0 : i32
    return %c0_i32, %c0_i32_0 : i32, i32
  }
  func.func @transform_2(%arg0: i32, %arg1: i32) -> (i32, i32) {
    %c0_i32 = arith.constant 0 : i32
    %c0_i32_0 = arith.constant 0 : i32
    %c0_i32_1 = arith.constant 0 : i32
    return %c0_i32, %c0_i32_0 : i32, i32
  }
  func.func @transform_3(%arg0: i32, %arg1: i32) -> (i32, i32) {
    %c0_i32 = arith.constant 0 : i32
    %c0_i32_0 = arith.constant 0 : i32
    return %arg0, %c0_i32 : i32, i32
  }
  func.func @transform_4(%arg0: i32, %arg1: i32) -> (i32, i32) {
    %c0_i32 = arith.constant 0 : i32
    %c0_i32_0 = arith.constant 0 : i32
    %c0_i32_1 = arith.constant 0 : i32
    return %c0_i32, %c0_i32_0 : i32, i32
  }
  func.func @transform_5(%arg0: i32, %arg1: i32) -> (i32, i32) {
    %c0_i32 = arith.constant 0 : i32
    %c0_i32_0 = arith.constant 0 : i32
    %c0_i32_1 = arith.constant 0 : i32
    return %c0_i32, %c0_i32_0 : i32, i32
  }
  func.func @transform_6(%arg0: i32, %arg1: i32) -> (i32, i32) {
    %c0_i32 = arith.constant 0 : i32
    %c0_i32_0 = arith.constant 0 : i32
    %c0_i32_1 = arith.constant 0 : i32
    return %c0_i32, %c0_i32_0 : i32, i32
  }
  func.func @transform_7(%arg0: i32, %arg1: i32) -> (i32, i32) {
    %c0_i32 = arith.constant 0 : i32
    %c0_i32_0 = arith.constant 0 : i32
    %c0_i32_1 = arith.constant 0 : i32
    return %c0_i32, %c0_i32_0 : i32, i32
  }
  func.func @transform_8(%arg0: i32, %arg1: i32) -> (i32, i32) {
    %c0_i32 = arith.constant 0 : i32
    %c0_i32_0 = arith.constant 0 : i32
    %c0_i32_1 = arith.constant 0 : i32
    return %c0_i32, %c0_i32_0 : i32, i32
  }
  func.func @transform_9(%arg0: i32, %arg1: i32) -> (i32, i32) {
    %c0_i32 = arith.constant 0 : i32
    %c0_i32_0 = arith.constant 0 : i32
    %c0_i32_1 = arith.constant 0 : i32
    return %c0_i32, %c0_i32_0 : i32, i32
  }
  func.func @transform_10(%arg0: i32, %arg1: i32) -> (i32, i32) {
    %c0_i32 = arith.constant 0 : i32
    %c0_i32_0 = arith.constant 0 : i32
    return %arg0, %c0_i32 : i32, i32
  }
}

</mosaic_0001>

<llo_original>
// kernel: tpu_custom_call.1
$region0: #{tpu_custom_call.1}
  #allocation0 [shape = 'u32[]', space=smem, size = 0x4, offset = 0x4, fixed_abs, tag = 'smem constant byte address 0x4 - core index']
  #allocation1 [shape = 'u32[72,128]{1,0:T(1,128)}', space=vmem, size = 0x9000, scoped, tag = 'internal scratch']
  #allocation2 [shape = 'f32[128,128]{1,0:T(8,128)}', space=vmem, size = 0x10000, scoped, tag = 'scratch operand']
  %s0 = inlined_call_operand.hbm [shape: bf16[128,128], index: 0, kind: input, shape index: {}]
  %s1 = inlined_call_operand.hbm [shape: bf16[128,128], index: 1, kind: input, shape index: {}]
  %s2 = inlined_call_operand.hbm [shape: bf16[128,128], index: 2, kind: input, shape index: {}]
  %s3 = inlined_call_operand.vmem [shape: f32[128,1], index: 3, kind: input, shape index: {}]
  %s4 = inlined_call_operand.vmem [shape: f32[128,128], index: 4, kind: input, shape index: {}]
  %s5 = inlined_call_operand.vmem [shape: f32[1,128], index: 5, kind: input, shape index: {}]
  %s6 = inlined_call_operand.hbm [shape: f32[128,128], index: 6, kind: input, shape index: {}]
  %s7 = inlined_call_operand.vmem [shape: f32[1,128], index: 7, kind: input, shape index: {}]
  %s8 = inlined_call_operand.hbm [shape: f32[128,128], index: 8, kind: input, shape index: {}]
  %s9 = inlined_call_operand.vmem [shape: f32[1,128], index: 9, kind: input, shape index: {}]
  %s10 = inlined_call_operand.hbm [shape: f32[128,128], index: 10, kind: output, shape index: {}]
  %s11 = sld [smem:[#allocation0]]
  $region78: #{tpu_custom_call.1} parent=0
    _
  %s13 = ssub.s32 1, %s11
  %s14 = scalar_select 0, %s13, %s11
  $region1: #{tpu_custom_call.1} parent=0
    #allocation3 [shape = 'u8[32768]{0}', space=vmem, size = 0x8000, scoped, tag = 'input window, operand 0, single buffered']
    #allocation4 [shape = 's32[1]{0}', space=sflag, size = 0x4, scoped, tag = 'scoped memory for tpu_custom_call.1']
    #allocation5 [shape = 's32[1]{0}', space=sflag, size = 0x4, scoped, tag = 'scoped memory for tpu_custom_call.1']
    #allocation6 [shape = 'u8[32768]{0}', space=vmem, size = 0x8000, scoped, tag = 'input window, operand 1, single buffered']
    #allocation7 [shape = 's32[1]{0}', space=sflag, size = 0x4, scoped, tag = 'scoped memory for tpu_custom_call.1']
    #allocation8 [shape = 'u8[32768]{0}', space=vmem, size = 0x8000, scoped, tag = 'input window, operand 2, single buffered']
    #allocation9 [shape = 'u8[65536]{0}', space=vmem, size = 0x10000, scoped, tag = 'input window, operand 6, single buffered']
    #allocation10 [shape = 's32[1]{0}', space=sflag, size = 0x4, scoped, tag = 'scoped memory for tpu_custom_call.1']
    #allocation11 [shape = 'u8[65536]{0}', space=vmem, size = 0x10000, scoped, tag = 'input window, operand 8, single buffered']
    #allocation12 [shape = 'u8[65536]{0}', space=vmem, size = 0x10000, scoped, tag = 'output window, operand 0, single buffered']
    %15 = vsyncpa [#allocation4], 0
    %16 = vsyncpa [#allocation7], 0
    %17 = vsyncpa [#allocation10], 0
    %18 = vsyncpa [#allocation5], 0
    // Predicated region
    $region2: #{tpu_custom_call.1} parent=1 // pred_check
      _
    $region3: #{tpu_custom_call.1} parent=1 // pred_check_branch
      %20 = sbr.rel (0) target = $region5
    $region4: #{tpu_custom_call.1} parent=1 // pred_region
      %22 = vsyncadd [#allocation4], 0
      %s23 = sshll.u32 %s0, 4
      %s24 = int_to_ptr.hbm [resolvable:$true] %s23
      %s25 = sshll.u32 [#allocation3], 4
      %s26 = int_to_ptr.vmem [resolvable:$true] %s25
      %31 = dma.hbm_to_vmem [thread:$0]  %s24, 1024, %s26, [#allocation4], 64, 64, 4
    $region5: #{tpu_custom_call.1} parent=1 // pred_fallthru
      _
    // Predicated region
    $region6: #{tpu_custom_call.1} parent=1 // pred_check
      _
    $region7: #{tpu_custom_call.1} parent=1 // pred_check_branch
      %33 = sbr.rel (0) target = $region9
    $region8: #{tpu_custom_call.1} parent=1 // pred_region
      %35 = vsyncadd [#allocation7], 0
      %s36 = sshll.u32 %s1, 4
      %s37 = int_to_ptr.hbm [resolvable:$true] %s36
      %s38 = sshll.u32 [#allocation6], 4
      %s39 = int_to_ptr.vmem [resolvable:$true] %s38
      %44 = dma.hbm_to_vmem [thread:$0]  %s37, 1024, %s39, [#allocation7], 64, 64, 4
    $region9: #{tpu_custom_call.1} parent=1 // pred_fallthru
      _
    // Predicated region
    $region10: #{tpu_custom_call.1} parent=1 // pred_check
      _
    $region11: #{tpu_custom_call.1} parent=1 // pred_check_branch
      %46 = sbr.rel (0) target = $region13
    $region12: #{tpu_custom_call.1} parent=1 // pred_region
      %48 = vsyncadd [#allocation7], 0
      %s49 = sshll.u32 %s2, 4
      %s50 = int_to_ptr.hbm [resolvable:$true] %s49
      %s51 = sshll.u32 [#allocation8], 4
      %s52 = int_to_ptr.vmem [resolvable:$true] %s51
      %57 = dma.hbm_to_vmem [thread:$0]  %s50, 1024, %s52, [#allocation7], 64, 64, 4
    $region13: #{tpu_custom_call.1} parent=1 // pred_fallthru
      _
    // Predicated region
    $region14: #{tpu_custom_call.1} parent=1 // pred_check
      _
    $region15: #{tpu_custom_call.1} parent=1 // pred_check_branch
      %59 = sbr.rel (0) target = $region17
    $region16: #{tpu_custom_call.1} parent=1 // pred_region
      _
    $region17: #{tpu_custom_call.1} parent=1 // pred_fallthru
      _
    // Predicated region
    $region18: #{tpu_custom_call.1} parent=1 // pred_check
      _
    $region19: #{tpu_custom_call.1} parent=1 // pred_check_branch
      %61 = sbr.rel (0) target = $region21
    $region20: #{tpu_custom_call.1} parent=1 // pred_region
      _
    $region21: #{tpu_custom_call.1} parent=1 // pred_fallthru
      _
    // Predicated region
    $region22: #{tpu_custom_call.1} parent=1 // pred_check
      _
    $region23: #{tpu_custom_call.1} parent=1 // pred_check_branch
      %63 = sbr.rel (0) target = $region25
    $region24: #{tpu_custom_call.1} parent=1 // pred_region
      _
    $region25: #{tpu_custom_call.1} parent=1 // pred_fallthru
      _
    // Predicated region
    $region26: #{tpu_custom_call.1} parent=1 // pred_check
      _
    $region27: #{tpu_custom_call.1} parent=1 // pred_check_branch
      %65 = sbr.rel (0) target = $region29
    $region28: #{tpu_custom_call.1} parent=1 // pred_region
      %67 = vsyncadd [#allocation10], 0
      %s68 = sshll.u32 %s6, 4
      %s69 = int_to_ptr.hbm [resolvable:$true] %s68
      %s70 = sshll.u32 [#allocation9], 4
      %s71 = int_to_ptr.vmem [resolvable:$true] %s70
      %76 = dma.hbm_to_vmem [thread:$0]  %s69, 2048, %s71, [#allocation10], 128, 128, 8
    $region29: #{tpu_custom_call.1} parent=1 // pred_fallthru
      _
    // Predicated region
    $region30: #{tpu_custom_call.1} parent=1 // pred_check
      _
    $region31: #{tpu_custom_call.1} parent=1 // pred_check_branch
      %78 = sbr.rel (0) target = $region33
    $region32: #{tpu_custom_call.1} parent=1 // pred_region
      _
    $region33: #{tpu_custom_call.1} parent=1 // pred_fallthru
      _
    // Predicated region
    $region34: #{tpu_custom_call.1} parent=1 // pred_check
      _
    $region35: #{tpu_custom_call.1} parent=1 // pred_check_branch
      %80 = sbr.rel (0) target = $region37
    $region36: #{tpu_custom_call.1} parent=1 // pred_region
      %82 = vsyncadd [#allocation10], 0
      %s83 = sshll.u32 %s8, 4
      %s84 = int_to_ptr.hbm [resolvable:$true] %s83
      %s85 = sshll.u32 [#allocation11], 4
      %s86 = int_to_ptr.vmem [resolvable:$true] %s85
      %91 = dma.hbm_to_vmem [thread:$0]  %s84, 2048, %s86, [#allocation10], 128, 128, 8
    $region37: #{tpu_custom_call.1} parent=1 // pred_fallthru
      _
    // Predicated region
    $region38: #{tpu_custom_call.1} parent=1 // pred_check
      _
    $region39: #{tpu_custom_call.1} parent=1 // pred_check_branch
      %93 = sbr.rel (0) target = $region41
    $region40: #{tpu_custom_call.1} parent=1 // pred_region
      _
    $region41: #{tpu_custom_call.1} parent=1 // pred_fallthru
      _
    // Predicated region
    $region42: #{tpu_custom_call.1} parent=1 // pred_check
      _
    $region43: #{tpu_custom_call.1} parent=1 // pred_check_branch
      %95 = sbr.rel (0) target = $region45
    $region44: #{tpu_custom_call.1} parent=1 // pred_region
      %97 = dma.done [#allocation4], 1024
    $region45: #{tpu_custom_call.1} parent=1 // pred_fallthru
      _
    // Predicated region
    $region46: #{tpu_custom_call.1} parent=1 // pred_check
      _
    $region47: #{tpu_custom_call.1} parent=1 // pred_check_branch
      %99 = sbr.rel (0) target = $region49
    $region48: #{tpu_custom_call.1} parent=1 // pred_region
      %101 = dma.done [#allocation7], 1024
    $region49: #{tpu_custom_call.1} parent=1 // pred_fallthru
      _
    // Predicated region
    $region50: #{tpu_custom_call.1} parent=1 // pred_check
      _
    $region51: #{tpu_custom_call.1} parent=1 // pred_check_branch
      %103 = sbr.rel (0) target = $region53
    $region52: #{tpu_custom_call.1} parent=1 // pred_region
      %105 = dma.done [#allocation7], 1024
    $region53: #{tpu_custom_call.1} parent=1 // pred_fallthru
      _
    // Predicated region
    $region54: #{tpu_custom_call.1} parent=1 // pred_check
      _
    $region55: #{tpu_custom_call.1} parent=1 // pred_check_branch
      %107 = sbr.rel (0) target = $region57
    $region56: #{tpu_custom_call.1} parent=1 // pred_region
      %109 = dma.done [#allocation10], 2048
    $region57: #{tpu_custom_call.1} parent=1 // pred_fallthru
      _
    // Predicated region
    $region58: #{tpu_custom_call.1} parent=1 // pred_check
      _
    $region59: #{tpu_custom_call.1} parent=1 // pred_check_branch
      %111 = sbr.rel (0) target = $region61
    $region60: #{tpu_custom_call.1} parent=1 // pred_region
      %113 = dma.done [#allocation10], 2048
    $region61: #{tpu_custom_call.1} parent=1 // pred_fallthru
      _
    %p114 = scmp.eq.s32.totalorder 0, 0
    // Predicated region
    $region62: #{tpu_custom_call.1} parent=1 // pred_check
      %p115 = pneg %p114
    $region63: #{tpu_custom_call.1} parent=1 // pred_check_branch
      %117 = sbr.rel (%p115) target = $region65
    $region64: #{tpu_custom_call.1} parent=1 // pred_region
      %118 = vst [vmem:[#allocation2] sm:$0xff] 0.0
      %119 = vst [vmem:[#allocation2 + $0x8] sm:$0xff] 0.0
      %120 = vst [vmem:[#allocation2 + $0x10] sm:$0xff] 0.0
      %121 = vst [vmem:[#allocation2 + $0x18] sm:$0xff] 0.0
      %122 = vst [vmem:[#allocation2 + $0x20] sm:$0xff] 0.0
      %123 = vst [vmem:[#allocation2 + $0x28] sm:$0xff] 0.0
      %124 = vst [vmem:[#allocation2 + $0x30] sm:$0xff] 0.0
      %125 = vst [vmem:[#allocation2 + $0x38] sm:$0xff] 0.0
      %126 = vst [vmem:[#allocation2 + $0x40] sm:$0xff] 0.0
      %127 = vst [vmem:[#allocation2 + $0x48] sm:$0xff] 0.0
      %128 = vst [vmem:[#allocation2 + $0x50] sm:$0xff] 0.0
      %129 = vst [vmem:[#allocation2 + $0x58] sm:$0xff] 0.0
      %130 = vst [vmem:[#allocation2 + $0x60] sm:$0xff] 0.0
      %131 = vst [vmem:[#allocation2 + $0x68] sm:$0xff] 0.0
      %132 = vst [vmem:[#allocation2 + $0x70] sm:$0xff] 0.0
      %133 = vst [vmem:[#allocation2 + $0x78] sm:$0xff] 0.0
    $region65: #{tpu_custom_call.1} parent=1 // pred_fallthru
      _
    %s134 = smul.u32 0, 128
    %s135 = sshra.s32 %s134, 3
    %s136 = sand.u32 %s134, 7
    %s137 = smul.addr %s135, 4
    %s138 = scalar_lea.vmem [#allocation6], %s137
    %v139 = vld [vmem:[%s138] sm:$0xf]
    %v140 = vld [vmem:[%s138 + $0x4] sm:$0xf]
    %v141 = vld [vmem:[%s138 + $0x8] sm:$0xf]
    %v142 = vld [vmem:[%s138 + $0xc] sm:$0xf]
    %v143 = vld [vmem:[%s138 + $0x10] sm:$0xf]
    %v144 = vld [vmem:[%s138 + $0x14] sm:$0xf]
    %v145 = vld [vmem:[%s138 + $0x18] sm:$0xf]
    %v146 = vld [vmem:[%s138 + $0x1c] sm:$0xf]
    %v147 = vld [vmem:[%s138 + $0x20] sm:$0xf]
    %v148 = vld [vmem:[%s138 + $0x24] sm:$0xf]
    %v149 = vld [vmem:[%s138 + $0x28] sm:$0xf]
    %v150 = vld [vmem:[%s138 + $0x2c] sm:$0xf]
    %v151 = vld [vmem:[%s138 + $0x30] sm:$0xf]
    %v152 = vld [vmem:[%s138 + $0x34] sm:$0xf]
    %v153 = vld [vmem:[%s138 + $0x38] sm:$0xf]
    %v154 = vld [vmem:[%s138 + $0x3c] sm:$0xf]
    %s155 = smul.addr %s135, 4
    %s156 = scalar_lea.vmem [#allocation8], %s155
    %v157 = vld [vmem:[%s156] sm:$0xf]
    %v158 = vld [vmem:[%s156 + $0x4] sm:$0xf]
    %v159 = vld [vmem:[%s156 + $0x8] sm:$0xf]
    %v160 = vld [vmem:[%s156 + $0xc] sm:$0xf]
    %v161 = vld [vmem:[%s156 + $0x10] sm:$0xf]
    %v162 = vld [vmem:[%s156 + $0x14] sm:$0xf]
    %v163 = vld [vmem:[%s156 + $0x18] sm:$0xf]
    %v164 = vld [vmem:[%s156 + $0x1c] sm:$0xf]
    %v165 = vld [vmem:[%s156 + $0x20] sm:$0xf]
    %v166 = vld [vmem:[%s156 + $0x24] sm:$0xf]
    %v167 = vld [vmem:[%s156 + $0x28] sm:$0xf]
    %v168 = vld [vmem:[%s156 + $0x2c] sm:$0xf]
    %v169 = vld [vmem:[%s156 + $0x30] sm:$0xf]
    %v170 = vld [vmem:[%s156 + $0x34] sm:$0xf]
    %v171 = vld [vmem:[%s156 + $0x38] sm:$0xf]
    %v172 = vld [vmem:[%s156 + $0x3c] sm:$0xf]
    %v173 = vld [vmem:[#allocation3] sm:$0xf]
    %v174 = vld [vmem:[#allocation3 + $0x4] sm:$0xf]
    %v175 = vld [vmem:[#allocation3 + $0x8] sm:$0xf]
    %v176 = vld [vmem:[#allocation3 + $0xc] sm:$0xf]
    %v177 = vld [vmem:[#allocation3 + $0x10] sm:$0xf]
    %v178 = vld [vmem:[#allocation3 + $0x14] sm:$0xf]
    %v179 = vld [vmem:[#allocation3 + $0x18] sm:$0xf]
    %v180 = vld [vmem:[#allocation3 + $0x1c] sm:$0xf]
    %v181 = vld [vmem:[#allocation3 + $0x20] sm:$0xf]
    %v182 = vld [vmem:[#allocation3 + $0x24] sm:$0xf]
    %v183 = vld [vmem:[#allocation3 + $0x28] sm:$0xf]
    %v184 = vld [vmem:[#allocation3 + $0x2c] sm:$0xf]
    %v185 = vld [vmem:[#allocation3 + $0x30] sm:$0xf]
    %v186 = vld [vmem:[#allocation3 + $0x34] sm:$0xf]
    %v187 = vld [vmem:[#allocation3 + $0x38] sm:$0xf]
    %v188 = vld [vmem:[#allocation3 + $0x3c] sm:$0xf]
    %v189 = vld [vmem:[#allocation2] sm:$0xff]
    %v190 = vld [vmem:[#allocation2 + $0x8] sm:$0xff]
    %v191 = vld [vmem:[#allocation2 + $0x10] sm:$0xff]
    %v192 = vld [vmem:[#allocation2 + $0x18] sm:$0xff]
    %v193 = vld [vmem:[#allocation2 + $0x20] sm:$0xff]
    %v194 = vld [vmem:[#allocation2 + $0x28] sm:$0xff]
    %v195 = vld [vmem:[#allocation2 + $0x30] sm:$0xff]
    %v196 = vld [vmem:[#allocation2 + $0x38] sm:$0xff]
    %v197 = vld [vmem:[#allocation2 + $0x40] sm:$0xff]
    %v198 = vld [vmem:[#allocation2 + $0x48] sm:$0xff]
    %v199 = vld [vmem:[#allocation2 + $0x50] sm:$0xff]
    %v200 = vld [vmem:[#allocation2 + $0x58] sm:$0xff]
    %v201 = vld [vmem:[#allocation2 + $0x60] sm:$0xff]
    %v202 = vld [vmem:[#allocation2 + $0x68] sm:$0xff]
    %v203 = vld [vmem:[#allocation2 + $0x70] sm:$0xff]
    %v204 = vld [vmem:[#allocation2 + $0x78] sm:$0xff]
    %v221 = vunpack.c.l.b16 %v173
    %v222 = vunpack.c.l.b16 %v174
    %v223 = vunpack.c.l.b16 %v175
    %v224 = vunpack.c.l.b16 %v176
    %v225 = vunpack.c.l.b16 %v177
    %v226 = vunpack.c.l.b16 %v178
    %v227 = vunpack.c.l.b16 %v179
    %v228 = vunpack.c.l.b16 %v180
    %v229 = vunpack.c.l.b16 %v181
    %v230 = vunpack.c.l.b16 %v182
    %v231 = vunpack.c.l.b16 %v183
    %v232 = vunpack.c.l.b16 %v184
    %v233 = vunpack.c.l.b16 %v185
    %v234 = vunpack.c.l.b16 %v186
    %v235 = vunpack.c.l.b16 %v187
    %v236 = vunpack.c.l.b16 %v188
    %v237 = vpack.c.b16 %v222, %v221
    %v238 = vpack.c.b16 %v224, %v223
    %v239 = vpack.c.b16 %v226, %v225
    %v240 = vpack.c.b16 %v228, %v227
    %v241 = vpack.c.b16 %v230, %v229
    %v242 = vpack.c.b16 %v232, %v231
    %v243 = vpack.c.b16 %v234, %v233
    %v244 = vpack.c.b16 %v236, %v235
    %v269 = vunpack.c.l.b16 %v157
    %v270 = vunpack.c.l.b16 %v158
    %v271 = vunpack.c.l.b16 %v159
    %v272 = vunpack.c.l.b16 %v160
    %v273 = vunpack.c.l.b16 %v161
    %v274 = vunpack.c.l.b16 %v162
    %v275 = vunpack.c.l.b16 %v163
    %v276 = vunpack.c.l.b16 %v164
    %v277 = vunpack.c.l.b16 %v165
    %v278 = vunpack.c.l.b16 %v166
    %v279 = vunpack.c.l.b16 %v167
    %v280 = vunpack.c.l.b16 %v168
    %v281 = vunpack.c.l.b16 %v169
    %v282 = vunpack.c.l.b16 %v170
    %v283 = vunpack.c.l.b16 %v171
    %v284 = vunpack.c.l.b16 %v172
    %v285 = vpack.c.b16 %v270, %v269
    %v286 = vpack.c.b16 %v272, %v271
    %v287 = vpack.c.b16 %v274, %v273
    %v288 = vpack.c.b16 %v276, %v275
    %v289 = vpack.c.b16 %v278, %v277
    %v290 = vpack.c.b16 %v280, %v279
    %v291 = vpack.c.b16 %v282, %v281
    %v292 = vpack.c.b16 %v284, %v283
    %301 = vmatpush.bf16.msra.mxu0 %v292
    %302 = vmatpush.bf16.msra.mxu0 %v291
    %303 = vmatpush.bf16.msra.mxu0 %v290
    %304 = vmatpush.bf16.msra.mxu0 %v289
    %305 = vmatpush.bf16.msra.mxu0 %v288
    %306 = vmatpush.bf16.msra.mxu0 %v287
    %307 = vmatpush.bf16.msra.mxu0 %v286
    %308 = vmatpush.bf16.msra.mxu0 %v285
    %309 = vmatmul.bf16.gmra.mxu0 %v237
    %v310 = vpop.f32.mrf.mxu0
    %v311 = vadd.f32 0.0, %v310
    %v312 = vpop.f32.mrf.mxu0
    %v313 = vadd.f32 0.0, %v312
    %314 = vmatmul.bf16.gmra.mxu0 %v238
    %v315 = vpop.f32.mrf.mxu0
    %v316 = vadd.f32 0.0, %v315
    %v317 = vpop.f32.mrf.mxu0
    %v318 = vadd.f32 0.0, %v317
    %319 = vmatmul.bf16.gmra.mxu0 %v239
    %v320 = vpop.f32.mrf.mxu0
    %v321 = vadd.f32 0.0, %v320
    %v322 = vpop.f32.mrf.mxu0
    %v323 = vadd.f32 0.0, %v322
    %324 = vmatmul.bf16.gmra.mxu0 %v240
    %v325 = vpop.f32.mrf.mxu0
    %v326 = vadd.f32 0.0, %v325
    %v327 = vpop.f32.mrf.mxu0
    %v328 = vadd.f32 0.0, %v327
    %329 = vmatmul.bf16.gmra.mxu0 %v241
    %v330 = vpop.f32.mrf.mxu0
    %v331 = vadd.f32 0.0, %v330
    %v332 = vpop.f32.mrf.mxu0
    %v333 = vadd.f32 0.0, %v332
    %334 = vmatmul.bf16.gmra.mxu0 %v242
    %v335 = vpop.f32.mrf.mxu0
    %v336 = vadd.f32 0.0, %v335
    %v337 = vpop.f32.mrf.mxu0
    %v338 = vadd.f32 0.0, %v337
    %339 = vmatmul.bf16.gmra.mxu0 %v243
    %v340 = vpop.f32.mrf.mxu0
    %v341 = vadd.f32 0.0, %v340
    %v342 = vpop.f32.mrf.mxu0
    %v343 = vadd.f32 0.0, %v342
    %344 = vmatmul.bf16.gmra.mxu0 %v244
    %v345 = vpop.f32.mrf.mxu0
    %v346 = vadd.f32 0.0, %v345
    %v347 = vpop.f32.mrf.mxu0
    %v348 = vadd.f32 0.0, %v347
    %349 = vdwg.mxu0
    %v366 = vunpack.c.l.b16 %v139
    %v367 = vunpack.c.l.b16 %v140
    %v368 = vunpack.c.l.b16 %v141
    %v369 = vunpack.c.l.b16 %v142
    %v370 = vunpack.c.l.b16 %v143
    %v371 = vunpack.c.l.b16 %v144
    %v372 = vunpack.c.l.b16 %v145
    %v373 = vunpack.c.l.b16 %v146
    %v374 = vunpack.c.l.b16 %v147
    %v375 = vunpack.c.l.b16 %v148
    %v376 = vunpack.c.l.b16 %v149
    %v377 = vunpack.c.l.b16 %v150
    %v378 = vunpack.c.l.b16 %v151
    %v379 = vunpack.c.l.b16 %v152
    %v380 = vunpack.c.l.b16 %v153
    %v381 = vunpack.c.l.b16 %v154
    %v382 = vpack.c.b16 %v367, %v366
    %v383 = vpack.c.b16 %v369, %v368
    %v384 = vpack.c.b16 %v371, %v370
    %v385 = vpack.c.b16 %v373, %v372
    %v386 = vpack.c.b16 %v375, %v374
    %v387 = vpack.c.b16 %v377, %v376
    %v388 = vpack.c.b16 %v379, %v378
    %v389 = vpack.c.b16 %v381, %v380
    %398 = vmatpush.bf16.msra.mxu0 %v389
    %399 = vmatpush.bf16.msra.mxu0 %v388
    %400 = vmatpush.bf16.msra.mxu0 %v387
    %401 = vmatpush.bf16.msra.mxu0 %v386
    %402 = vmatpush.bf16.msra.mxu0 %v385
    %403 = vmatpush.bf16.msra.mxu0 %v384
    %404 = vmatpush.bf16.msra.mxu0 %v383
    %405 = vmatpush.bf16.msra.mxu0 %v382
    %406 = vmatmul.bf16.gmra.mxu0 %v237
    %v407 = vpop.f32.mrf.mxu0
    %v408 = vadd.f32 %v311, %v407
    %v409 = vpop.f32.mrf.mxu0
    %v410 = vadd.f32 %v313, %v409
    %411 = vmatmul.bf16.gmra.mxu0 %v238
    %v412 = vpop.f32.mrf.mxu0
    %v413 = vadd.f32 %v316, %v412
    %v414 = vpop.f32.mrf.mxu0
    %v415 = vadd.f32 %v318, %v414
    %416 = vmatmul.bf16.gmra.mxu0 %v239
    %v417 = vpop.f32.mrf.mxu0
    %v418 = vadd.f32 %v321, %v417
    %v419 = vpop.f32.mrf.mxu0
    %v420 = vadd.f32 %v323, %v419
    %421 = vmatmul.bf16.gmra.mxu0 %v240
    %v422 = vpop.f32.mrf.mxu0
    %v423 = vadd.f32 %v326, %v422
    %v424 = vpop.f32.mrf.mxu0
    %v425 = vadd.f32 %v328, %v424
    %426 = vmatmul.bf16.gmra.mxu0 %v241
    %v427 = vpop.f32.mrf.mxu0
    %v428 = vadd.f32 %v331, %v427
    %v429 = vpop.f32.mrf.mxu0
    %v430 = vadd.f32 %v333, %v429
    %431 = vmatmul.bf16.gmra.mxu0 %v242
    %v432 = vpop.f32.mrf.mxu0
    %v433 = vadd.f32 %v336, %v432
    %v434 = vpop.f32.mrf.mxu0
    %v435 = vadd.f32 %v338, %v434
    %436 = vmatmul.bf16.gmra.mxu0 %v243
    %v437 = vpop.f32.mrf.mxu0
    %v438 = vadd.f32 %v341, %v437
    %v439 = vpop.f32.mrf.mxu0
    %v440 = vadd.f32 %v343, %v439
    %441 = vmatmul.bf16.gmra.mxu0 %v244
    %v442 = vpop.f32.mrf.mxu0
    %v443 = vadd.f32 %v346, %v442
    %v444 = vpop.f32.mrf.mxu0
    %v445 = vadd.f32 %v348, %v444
    %446 = vdwg.mxu0
    %v447 = vadd.f32 %v189, %v408
    %v448 = vadd.f32 %v190, %v410
    %v449 = vadd.f32 %v191, %v413
    %v450 = vadd.f32 %v192, %v415
    %v451 = vadd.f32 %v193, %v418
    %v452 = vadd.f32 %v194, %v420
    %v453 = vadd.f32 %v195, %v423
    %v454 = vadd.f32 %v196, %v425
    %v455 = vadd.f32 %v197, %v428
    %v456 = vadd.f32 %v198, %v430
    %v457 = vadd.f32 %v199, %v433
    %v458 = vadd.f32 %v200, %v435
    %v459 = vadd.f32 %v201, %v438
    %v460 = vadd.f32 %v202, %v440
    %v461 = vadd.f32 %v203, %v443
    %v462 = vadd.f32 %v204, %v445
    %463 = vst [vmem:[#allocation2] sm:$0xff] %v447
    %464 = vst [vmem:[#allocation2 + $0x8] sm:$0xff] %v448
    %465 = vst [vmem:[#allocation2 + $0x10] sm:$0xff] %v449
    %466 = vst [vmem:[#allocation2 + $0x18] sm:$0xff] %v450
    %467 = vst [vmem:[#allocation2 + $0x20] sm:$0xff] %v451
    %468 = vst [vmem:[#allocation2 + $0x28] sm:$0xff] %v452
    %469 = vst [vmem:[#allocation2 + $0x30] sm:$0xff] %v453
    %470 = vst [vmem:[#allocation2 + $0x38] sm:$0xff] %v454
    %471 = vst [vmem:[#allocation2 + $0x40] sm:$0xff] %v455
    %472 = vst [vmem:[#allocation2 + $0x48] sm:$0xff] %v456
    %473 = vst [vmem:[#allocation2 + $0x50] sm:$0xff] %v457
    %474 = vst [vmem:[#allocation2 + $0x58] sm:$0xff] %v458
    %475 = vst [vmem:[#allocation2 + $0x60] sm:$0xff] %v459
    %476 = vst [vmem:[#allocation2 + $0x68] sm:$0xff] %v460
    %477 = vst [vmem:[#allocation2 + $0x70] sm:$0xff] %v461
    %478 = vst [vmem:[#allocation2 + $0x78] sm:$0xff] %v462
    // Predicated region
    $region66: #{tpu_custom_call.1} parent=1 // pred_check
      %p479 = pneg %p114
    $region67: #{tpu_custom_call.1} parent=1 // pred_check_branch
      %481 = sbr.rel (%p479) target = $region69
    $region68: #{tpu_custom_call.1} parent=1 // pred_region
      %v482 = vld [vmem:[#allocation2] sm:$0xff]
      %v483 = vld [vmem:[#allocation2 + $0x8] sm:$0xff]
      %v484 = vld [vmem:[#allocation2 + $0x10] sm:$0xff]
      %v485 = vld [vmem:[#allocation2 + $0x18] sm:$0xff]
      %v486 = vld [vmem:[#allocation2 + $0x20] sm:$0xff]
      %v487 = vld [vmem:[#allocation2 + $0x28] sm:$0xff]
      %v488 = vld [vmem:[#allocation2 + $0x30] sm:$0xff]
      %v489 = vld [vmem:[#allocation2 + $0x38] sm:$0xff]
      %v490 = vld [vmem:[#allocation2 + $0x40] sm:$0xff]
      %v491 = vld [vmem:[#allocation2 + $0x48] sm:$0xff]
      %v492 = vld [vmem:[#allocation2 + $0x50] sm:$0xff]
      %v493 = vld [vmem:[#allocation2 + $0x58] sm:$0xff]
      %v494 = vld [vmem:[#allocation2 + $0x60] sm:$0xff]
      %v495 = vld [vmem:[#allocation2 + $0x68] sm:$0xff]
      %v496 = vld [vmem:[#allocation2 + $0x70] sm:$0xff]
      %v497 = vld [vmem:[#allocation2 + $0x78] sm:$0xff]
      %v498 = vld [vmem:[%s3] sm:$0xff]
      %v499 = vld [vmem:[%s3 + $0x8] sm:$0xff]
      %v500 = vld [vmem:[%s3 + $0x10] sm:$0xff]
      %v501 = vld [vmem:[%s3 + $0x18] sm:$0xff]
      %v502 = vld [vmem:[%s3 + $0x20] sm:$0xff]
      %v503 = vld [vmem:[%s3 + $0x28] sm:$0xff]
      %v504 = vld [vmem:[%s3 + $0x30] sm:$0xff]
      %v505 = vld [vmem:[%s3 + $0x38] sm:$0xff]
      %v506 = vld [vmem:[%s3 + $0x40] sm:$0xff]
      %v507 = vld [vmem:[%s3 + $0x48] sm:$0xff]
      %v508 = vld [vmem:[%s3 + $0x50] sm:$0xff]
      %v509 = vld [vmem:[%s3 + $0x58] sm:$0xff]
      %v510 = vld [vmem:[%s3 + $0x60] sm:$0xff]
      %v511 = vld [vmem:[%s3 + $0x68] sm:$0xff]
      %v512 = vld [vmem:[%s3 + $0x70] sm:$0xff]
      %v513 = vld [vmem:[%s3 + $0x78] sm:$0xff]
      %515 = vset.pattern.permute.xlu0 0
      %516 = vperm.xlu0 %515, %v498
      %v517 = vpop.permute.xlu0 %516
      %520 = vset.pattern.permute.xlu0 0
      %521 = vperm.xlu0 %520, %v499
      %v522 = vpop.permute.xlu0 %521
      %525 = vset.pattern.permute.xlu0 0
      %526 = vperm.xlu0 %525, %v500
      %v527 = vpop.permute.xlu0 %526
      %530 = vset.pattern.permute.xlu0 0
      %531 = vperm.xlu0 %530, %v501
      %v532 = vpop.permute.xlu0 %531
      %535 = vset.pattern.permute.xlu0 0
      %536 = vperm.xlu0 %535, %v502
      %v537 = vpop.permute.xlu0 %536
      %540 = vset.pattern.permute.xlu0 0
      %541 = vperm.xlu0 %540, %v503
      %v542 = vpop.permute.xlu0 %541
      %545 = vset.pattern.permute.xlu0 0
      %546 = vperm.xlu0 %545, %v504
      %v547 = vpop.permute.xlu0 %546
      %550 = vset.pattern.permute.xlu0 0
      %551 = vperm.xlu0 %550, %v505
      %v552 = vpop.permute.xlu0 %551
      %555 = vset.pattern.permute.xlu0 0
      %556 = vperm.xlu0 %555, %v506
      %v557 = vpop.permute.xlu0 %556
      %560 = vset.pattern.permute.xlu0 0
      %561 = vperm.xlu0 %560, %v507
      %v562 = vpop.permute.xlu0 %561
      %565 = vset.pattern.permute.xlu0 0
      %566 = vperm.xlu0 %565, %v508
      %v567 = vpop.permute.xlu0 %566
      %570 = vset.pattern.permute.xlu0 0
      %571 = vperm.xlu0 %570, %v509
      %v572 = vpop.permute.xlu0 %571
      %575 = vset.pattern.permute.xlu0 0
      %576 = vperm.xlu0 %575, %v510
      %v577 = vpop.permute.xlu0 %576
      %580 = vset.pattern.permute.xlu0 0
      %581 = vperm.xlu0 %580, %v511
      %v582 = vpop.permute.xlu0 %581
      %585 = vset.pattern.permute.xlu0 0
      %586 = vperm.xlu0 %585, %v512
      %v587 = vpop.permute.xlu0 %586
      %590 = vset.pattern.permute.xlu0 0
      %591 = vperm.xlu0 %590, %v513
      %v592 = vpop.permute.xlu0 %591
      %v594 = vmul.f32 %v482, %v517
      %v595 = vmul.f32 %v483, %v522
      %v596 = vmul.f32 %v484, %v527
      %v597 = vmul.f32 %v485, %v532
      %v598 = vmul.f32 %v486, %v537
      %v599 = vmul.f32 %v487, %v542
      %v600 = vmul.f32 %v488, %v547
      %v601 = vmul.f32 %v489, %v552
      %v602 = vmul.f32 %v490, %v557
      %v603 = vmul.f32 %v491, %v562
      %v604 = vmul.f32 %v492, %v567
      %v605 = vmul.f32 %v493, %v572
      %v606 = vmul.f32 %v494, %v577
      %v607 = vmul.f32 %v495, %v582
      %v608 = vmul.f32 %v496, %v587
      %v609 = vmul.f32 %v497, %v592
      %v610 = vld [vmem:[%s4] sm:$0xff]
      %v611 = vld [vmem:[%s4 + $0x8] sm:$0xff]
      %v612 = vld [vmem:[%s4 + $0x10] sm:$0xff]
      %v613 = vld [vmem:[%s4 + $0x18] sm:$0xff]
      %v614 = vld [vmem:[%s4 + $0x20] sm:$0xff]
      %v615 = vld [vmem:[%s4 + $0x28] sm:$0xff]
      %v616 = vld [vmem:[%s4 + $0x30] sm:$0xff]
      %v617 = vld [vmem:[%s4 + $0x38] sm:$0xff]
      %v618 = vld [vmem:[%s4 + $0x40] sm:$0xff]
      %v619 = vld [vmem:[%s4 + $0x48] sm:$0xff]
      %v620 = vld [vmem:[%s4 + $0x50] sm:$0xff]
      %v621 = vld [vmem:[%s4 + $0x58] sm:$0xff]
      %v622 = vld [vmem:[%s4 + $0x60] sm:$0xff]
      %v623 = vld [vmem:[%s4 + $0x68] sm:$0xff]
      %v624 = vld [vmem:[%s4 + $0x70] sm:$0xff]
      %v625 = vld [vmem:[%s4 + $0x78] sm:$0xff]
      %v626 = vld [vmem:[%s5] sm:$0x1]
      %v628 = vperm.slane %v626, 0
      %630 = vmatpush.msra.mxu0 %v625
      %631 = vmatpush.msra.mxu0 %v624
      %632 = vmatpush.msra.mxu0 %v623
      %633 = vmatpush.msra.mxu0 %v622
      %634 = vmatpush.msra.mxu0 %v621
      %635 = vmatpush.msra.mxu0 %v620
      %636 = vmatpush.msra.mxu0 %v619
      %637 = vmatpush.msra.mxu0 %v618
      %638 = vmatpush.msra.mxu0 %v617
      %639 = vmatpush.msra.mxu0 %v616
      %640 = vmatpush.msra.mxu0 %v615
      %641 = vmatpush.msra.mxu0 %v614
      %642 = vmatpush.msra.mxu0 %v613
      %643 = vmatpush.msra.mxu0 %v612
      %644 = vmatpush.msra.mxu0 %v611
      %645 = vmatpush.msra.mxu0 %v610
      %646 = vmatmul.f32.gmra.mxu0 %v594
      %v647 = vpop.f32.mrf.mxu0
      %v648 = vadd.f32 %v628, %v647
      %649 = vmatmul.f32.gmra.mxu0 %v595
      %v650 = vpop.f32.mrf.mxu0
      %v651 = vadd.f32 %v628, %v650
      %652 = vmatmul.f32.gmra.mxu0 %v596
      %v653 = vpop.f32.mrf.mxu0
      %v654 = vadd.f32 %v628, %v653
      %655 = vmatmul.f32.gmra.mxu0 %v597
      %v656 = vpop.f32.mrf.mxu0
      %v657 = vadd.f32 %v628, %v656
      %658 = vmatmul.f32.gmra.mxu0 %v598
      %v659 = vpop.f32.mrf.mxu0
      %v660 = vadd.f32 %v628, %v659
      %661 = vmatmul.f32.gmra.mxu0 %v599
      %v662 = vpop.f32.mrf.mxu0
      %v663 = vadd.f32 %v628, %v662
      %664 = vmatmul.f32.gmra.mxu0 %v600
      %v665 = vpop.f32.mrf.mxu0
      %v666 = vadd.f32 %v628, %v665
      %667 = vmatmul.f32.gmra.mxu0 %v601
      %v668 = vpop.f32.mrf.mxu0
      %v669 = vadd.f32 %v628, %v668
      %670 = vmatmul.f32.gmra.mxu0 %v602
      %v671 = vpop.f32.mrf.mxu0
      %v672 = vadd.f32 %v628, %v671
      %673 = vmatmul.f32.gmra.mxu0 %v603
      %v674 = vpop.f32.mrf.mxu0
      %v675 = vadd.f32 %v628, %v674
      %676 = vmatmul.f32.gmra.mxu0 %v604
      %v677 = vpop.f32.mrf.mxu0
      %v678 = vadd.f32 %v628, %v677
      %679 = vmatmul.f32.gmra.mxu0 %v605
      %v680 = vpop.f32.mrf.mxu0
      %v681 = vadd.f32 %v628, %v680
      %682 = vmatmul.f32.gmra.mxu0 %v606
      %v683 = vpop.f32.mrf.mxu0
      %v684 = vadd.f32 %v628, %v683
      %685 = vmatmul.f32.gmra.mxu0 %v607
      %v686 = vpop.f32.mrf.mxu0
      %v687 = vadd.f32 %v628, %v686
      %688 = vmatmul.f32.gmra.mxu0 %v608
      %v689 = vpop.f32.mrf.mxu0
      %v690 = vadd.f32 %v628, %v689
      %691 = vmatmul.f32.gmra.mxu0 %v609
      %v692 = vpop.f32.mrf.mxu0
      %v693 = vadd.f32 %v628, %v692
      %694 = vdwg.mxu0
      %v695 = vmax.f32 %v648, 0.0
      %v696 = vmax.f32 %v651, 0.0
      %v697 = vmax.f32 %v654, 0.0
      %v698 = vmax.f32 %v657, 0.0
      %v699 = vmax.f32 %v660, 0.0
      %v700 = vmax.f32 %v663, 0.0
      %v701 = vmax.f32 %v666, 0.0
      %v702 = vmax.f32 %v669, 0.0
      %v703 = vmax.f32 %v672, 0.0
      %v704 = vmax.f32 %v675, 0.0
      %v705 = vmax.f32 %v678, 0.0
      %v706 = vmax.f32 %v681, 0.0
      %v707 = vmax.f32 %v684, 0.0
      %v708 = vmax.f32 %v687, 0.0
      %v709 = vmax.f32 %v690, 0.0
      %v710 = vmax.f32 %v693, 0.0
      %v711 = vld [vmem:[#allocation9] sm:$0xff]
      %v712 = vld [vmem:[#allocation9 + $0x8] sm:$0xff]
      %v713 = vld [vmem:[#allocation9 + $0x10] sm:$0xff]
      %v714 = vld [vmem:[#allocation9 + $0x18] sm:$0xff]
      %v715 = vld [vmem:[#allocation9 + $0x20] sm:$0xff]
      %v716 = vld [vmem:[#allocation9 + $0x28] sm:$0xff]
      %v717 = vld [vmem:[#allocation9 + $0x30] sm:$0xff]
      %v718 = vld [vmem:[#allocation9 + $0x38] sm:$0xff]
      %v719 = vld [vmem:[#allocation9 + $0x40] sm:$0xff]
      %v720 = vld [vmem:[#allocation9 + $0x48] sm:$0xff]
      %v721 = vld [vmem:[#allocation9 + $0x50] sm:$0xff]
      %v722 = vld [vmem:[#allocation9 + $0x58] sm:$0xff]
      %v723 = vld [vmem:[#allocation9 + $0x60] sm:$0xff]
      %v724 = vld [vmem:[#allocation9 + $0x68] sm:$0xff]
      %v725 = vld [vmem:[#allocation9 + $0x70] sm:$0xff]
      %v726 = vld [vmem:[#allocation9 + $0x78] sm:$0xff]
      %v727 = vld [vmem:[%s7] sm:$0x1]
      %v729 = vperm.slane %v727, 0
      %731 = vmatpush.msra.mxu0 %v726
      %732 = vmatpush.msra.mxu0 %v725
      %733 = vmatpush.msra.mxu0 %v724
      %734 = vmatpush.msra.mxu0 %v723
      %735 = vmatpush.msra.mxu0 %v722
      %736 = vmatpush.msra.mxu0 %v721
      %737 = vmatpush.msra.mxu0 %v720
      %738 = vmatpush.msra.mxu0 %v719
      %739 = vmatpush.msra.mxu0 %v718
      %740 = vmatpush.msra.mxu0 %v717
      %741 = vmatpush.msra.mxu0 %v716
      %742 = vmatpush.msra.mxu0 %v715
      %743 = vmatpush.msra.mxu0 %v714
      %744 = vmatpush.msra.mxu0 %v713
      %745 = vmatpush.msra.mxu0 %v712
      %746 = vmatpush.msra.mxu0 %v711
      %747 = vmatmul.f32.gmra.mxu0 %v695
      %v748 = vpop.f32.mrf.mxu0
      %v749 = vadd.f32 %v729, %v748
      %750 = vmatmul.f32.gmra.mxu0 %v696
      %v751 = vpop.f32.mrf.mxu0
      %v752 = vadd.f32 %v729, %v751
      %753 = vmatmul.f32.gmra.mxu0 %v697
      %v754 = vpop.f32.mrf.mxu0
      %v755 = vadd.f32 %v729, %v754
      %756 = vmatmul.f32.gmra.mxu0 %v698
      %v757 = vpop.f32.mrf.mxu0
      %v758 = vadd.f32 %v729, %v757
      %759 = vmatmul.f32.gmra.mxu0 %v699
      %v760 = vpop.f32.mrf.mxu0
      %v761 = vadd.f32 %v729, %v760
      %762 = vmatmul.f32.gmra.mxu0 %v700
      %v763 = vpop.f32.mrf.mxu0
      %v764 = vadd.f32 %v729, %v763
      %765 = vmatmul.f32.gmra.mxu0 %v701
      %v766 = vpop.f32.mrf.mxu0
      %v767 = vadd.f32 %v729, %v766
      %768 = vmatmul.f32.gmra.mxu0 %v702
      %v769 = vpop.f32.mrf.mxu0
      %v770 = vadd.f32 %v729, %v769
      %771 = vmatmul.f32.gmra.mxu0 %v703
      %v772 = vpop.f32.mrf.mxu0
      %v773 = vadd.f32 %v729, %v772
      %774 = vmatmul.f32.gmra.mxu0 %v704
      %v775 = vpop.f32.mrf.mxu0
      %v776 = vadd.f32 %v729, %v775
      %777 = vmatmul.f32.gmra.mxu0 %v705
      %v778 = vpop.f32.mrf.mxu0
      %v779 = vadd.f32 %v729, %v778
      %780 = vmatmul.f32.gmra.mxu0 %v706
      %v781 = vpop.f32.mrf.mxu0
      %v782 = vadd.f32 %v729, %v781
      %783 = vmatmul.f32.gmra.mxu0 %v707
      %v784 = vpop.f32.mrf.mxu0
      %v785 = vadd.f32 %v729, %v784
      %786 = vmatmul.f32.gmra.mxu0 %v708
      %v787 = vpop.f32.mrf.mxu0
      %v788 = vadd.f32 %v729, %v787
      %789 = vmatmul.f32.gmra.mxu0 %v709
      %v790 = vpop.f32.mrf.mxu0
      %v791 = vadd.f32 %v729, %v790
      %792 = vmatmul.f32.gmra.mxu0 %v710
      %v793 = vpop.f32.mrf.mxu0
      %v794 = vadd.f32 %v729, %v793
      %795 = vdwg.mxu0
      %v796 = vmax.f32 %v749, 0.0
      %v797 = vmax.f32 %v752, 0.0
      %v798 = vmax.f32 %v755, 0.0
      %v799 = vmax.f32 %v758, 0.0
      %v800 = vmax.f32 %v761, 0.0
      %v801 = vmax.f32 %v764, 0.0
      %v802 = vmax.f32 %v767, 0.0
      %v803 = vmax.f32 %v770, 0.0
      %v804 = vmax.f32 %v773, 0.0
      %v805 = vmax.f32 %v776, 0.0
      %v806 = vmax.f32 %v779, 0.0
      %v807 = vmax.f32 %v782, 0.0
      %v808 = vmax.f32 %v785, 0.0
      %v809 = vmax.f32 %v788, 0.0
      %v810 = vmax.f32 %v791, 0.0
      %v811 = vmax.f32 %v794, 0.0
      %v812 = vld [vmem:[#allocation11] sm:$0xff]
      %v813 = vld [vmem:[#allocation11 + $0x8] sm:$0xff]
      %v814 = vld [vmem:[#allocation11 + $0x10] sm:$0xff]
      %v815 = vld [vmem:[#allocation11 + $0x18] sm:$0xff]
      %v816 = vld [vmem:[#allocation11 + $0x20] sm:$0xff]
      %v817 = vld [vmem:[#allocation11 + $0x28] sm:$0xff]
      %v818 = vld [vmem:[#allocation11 + $0x30] sm:$0xff]
      %v819 = vld [vmem:[#allocation11 + $0x38] sm:$0xff]
      %v820 = vld [vmem:[#allocation11 + $0x40] sm:$0xff]
      %v821 = vld [vmem:[#allocation11 + $0x48] sm:$0xff]
      %v822 = vld [vmem:[#allocation11 + $0x50] sm:$0xff]
      %v823 = vld [vmem:[#allocation11 + $0x58] sm:$0xff]
      %v824 = vld [vmem:[#allocation11 + $0x60] sm:$0xff]
      %v825 = vld [vmem:[#allocation11 + $0x68] sm:$0xff]
      %v826 = vld [vmem:[#allocation11 + $0x70] sm:$0xff]
      %v827 = vld [vmem:[#allocation11 + $0x78] sm:$0xff]
      %v828 = vld [vmem:[%s9] sm:$0x1]
      %v830 = vperm.slane %v828, 0
      %832 = vmatpush.msra.mxu0 %v827
      %833 = vmatpush.msra.mxu0 %v826
      %834 = vmatpush.msra.mxu0 %v825
      %835 = vmatpush.msra.mxu0 %v824
      %836 = vmatpush.msra.mxu0 %v823
      %837 = vmatpush.msra.mxu0 %v822
      %838 = vmatpush.msra.mxu0 %v821
      %839 = vmatpush.msra.mxu0 %v820
      %840 = vmatpush.msra.mxu0 %v819
      %841 = vmatpush.msra.mxu0 %v818
      %842 = vmatpush.msra.mxu0 %v817
      %843 = vmatpush.msra.mxu0 %v816
      %844 = vmatpush.msra.mxu0 %v815
      %845 = vmatpush.msra.mxu0 %v814
      %846 = vmatpush.msra.mxu0 %v813
      %847 = vmatpush.msra.mxu0 %v812
      %848 = vmatmul.f32.gmra.mxu0 %v796
      %v849 = vpop.f32.mrf.mxu0
      %v850 = vadd.f32 %v830, %v849
      %851 = vmatmul.f32.gmra.mxu0 %v797
      %v852 = vpop.f32.mrf.mxu0
      %v853 = vadd.f32 %v830, %v852
      %854 = vmatmul.f32.gmra.mxu0 %v798
      %v855 = vpop.f32.mrf.mxu0
      %v856 = vadd.f32 %v830, %v855
      %857 = vmatmul.f32.gmra.mxu0 %v799
      %v858 = vpop.f32.mrf.mxu0
      %v859 = vadd.f32 %v830, %v858
      %860 = vmatmul.f32.gmra.mxu0 %v800
      %v861 = vpop.f32.mrf.mxu0
      %v862 = vadd.f32 %v830, %v861
      %863 = vmatmul.f32.gmra.mxu0 %v801
      %v864 = vpop.f32.mrf.mxu0
      %v865 = vadd.f32 %v830, %v864
      %866 = vmatmul.f32.gmra.mxu0 %v802
      %v867 = vpop.f32.mrf.mxu0
      %v868 = vadd.f32 %v830, %v867
      %869 = vmatmul.f32.gmra.mxu0 %v803
      %v870 = vpop.f32.mrf.mxu0
      %v871 = vadd.f32 %v830, %v870
      %872 = vmatmul.f32.gmra.mxu0 %v804
      %v873 = vpop.f32.mrf.mxu0
      %v874 = vadd.f32 %v830, %v873
      %875 = vmatmul.f32.gmra.mxu0 %v805
      %v876 = vpop.f32.mrf.mxu0
      %v877 = vadd.f32 %v830, %v876
      %878 = vmatmul.f32.gmra.mxu0 %v806
      %v879 = vpop.f32.mrf.mxu0
      %v880 = vadd.f32 %v830, %v879
      %881 = vmatmul.f32.gmra.mxu0 %v807
      %v882 = vpop.f32.mrf.mxu0
      %v883 = vadd.f32 %v830, %v882
      %884 = vmatmul.f32.gmra.mxu0 %v808
      %v885 = vpop.f32.mrf.mxu0
      %v886 = vadd.f32 %v830, %v885
      %887 = vmatmul.f32.gmra.mxu0 %v809
      %v888 = vpop.f32.mrf.mxu0
      %v889 = vadd.f32 %v830, %v888
      %890 = vmatmul.f32.gmra.mxu0 %v810
      %v891 = vpop.f32.mrf.mxu0
      %v892 = vadd.f32 %v830, %v891
      %893 = vmatmul.f32.gmra.mxu0 %v811
      %v894 = vpop.f32.mrf.mxu0
      %v895 = vadd.f32 %v830, %v894
      %896 = vdwg.mxu0
      %v897 = vmax.f32 %v850, 0.0
      %v898 = vmax.f32 %v853, 0.0
      %v899 = vmax.f32 %v856, 0.0
      %v900 = vmax.f32 %v859, 0.0
      %v901 = vmax.f32 %v862, 0.0
      %v902 = vmax.f32 %v865, 0.0
      %v903 = vmax.f32 %v868, 0.0
      %v904 = vmax.f32 %v871, 0.0
      %v905 = vmax.f32 %v874, 0.0
      %v906 = vmax.f32 %v877, 0.0
      %v907 = vmax.f32 %v880, 0.0
      %v908 = vmax.f32 %v883, 0.0
      %v909 = vmax.f32 %v886, 0.0
      %v910 = vmax.f32 %v889, 0.0
      %v911 = vmax.f32 %v892, 0.0
      %v912 = vmax.f32 %v895, 0.0
      %913 = vst [vmem:[#allocation12] sm:$0xff] %v897
      %914 = vst [vmem:[#allocation12 + $0x8] sm:$0xff] %v898
      %915 = vst [vmem:[#allocation12 + $0x10] sm:$0xff] %v899
      %916 = vst [vmem:[#allocation12 + $0x18] sm:$0xff] %v900
      %917 = vst [vmem:[#allocation12 + $0x20] sm:$0xff] %v901
      %918 = vst [vmem:[#allocation12 + $0x28] sm:$0xff] %v902
      %919 = vst [vmem:[#allocation12 + $0x30] sm:$0xff] %v903
      %920 = vst [vmem:[#allocation12 + $0x38] sm:$0xff] %v904
      %921 = vst [vmem:[#allocation12 + $0x40] sm:$0xff] %v905
      %922 = vst [vmem:[#allocation12 + $0x48] sm:$0xff] %v906
      %923 = vst [vmem:[#allocation12 + $0x50] sm:$0xff] %v907
      %924 = vst [vmem:[#allocation12 + $0x58] sm:$0xff] %v908
      %925 = vst [vmem:[#allocation12 + $0x60] sm:$0xff] %v909
      %926 = vst [vmem:[#allocation12 + $0x68] sm:$0xff] %v910
      %927 = vst [vmem:[#allocation12 + $0x70] sm:$0xff] %v911
      %928 = vst [vmem:[#allocation12 + $0x78] sm:$0xff] %v912
    $region69: #{tpu_custom_call.1} parent=1 // pred_fallthru
      _
    // Predicated region
    $region70: #{tpu_custom_call.1} parent=1 // pred_check
      _
    $region71: #{tpu_custom_call.1} parent=1 // pred_check_branch
      %930 = sbr.rel (0) target = $region73
    $region72: #{tpu_custom_call.1} parent=1 // pred_region
      %932 = vsyncadd [#allocation5], 0
      %s933 = sshll.u32 [#allocation12], 4
      %s934 = int_to_ptr.vmem [resolvable:$true] %s933
      %s935 = sshll.u32 %s10, 4
      %s936 = int_to_ptr.hbm [resolvable:$true] %s935
      %941 = dma.vmem_to_hbm [thread:$0]  %s934, 2048, %s936, [#allocation5], 128, 128, 8
    $region73: #{tpu_custom_call.1} parent=1 // pred_fallthru
      _
    // Predicated region
    $region74: #{tpu_custom_call.1} parent=1 // pred_check
      _
    $region75: #{tpu_custom_call.1} parent=1 // pred_check_branch
      %943 = sbr.rel (0) target = $region77
    $region76: #{tpu_custom_call.1} parent=1 // pred_region
      %945 = dma.done [#allocation5], 2048
    $region77: #{tpu_custom_call.1} parent=1 // pred_fallthru
      _
    %946 = vsyncpa [#allocation4], 1
    %947 = vsyncpa [#allocation7], 1
    %948 = vsyncpa [#allocation10], 1
    %949 = vsyncpa [#allocation5], 1

</llo_original>
